<compile_context>
chip_gen: v7x
topology: tpu7x:2x2x1
jax: 0.10.0
libtpu: 0.0.40
codegen_flags: <defaults>
</compile_context>

<pallas_src>
import functools

import jax
import jax.numpy as jnp
from jax.experimental import pallas as pl
from jax.experimental.pallas import tpu as pltpu


def _round_up(x, m):
    return (x + m - 1) // m * m


def _choose_time_tile(L, pad, target):
    """Pick a lane-aligned time tile that divides L exactly, so x needs no HBM
    padding/copy and the output needs no slice copy."""
    if L % 128 != 0:
        # TODO(synk): non-128-aligned L falls back to one time tile per row.
        return L
    target = max(128, _round_up(target, 128))
    divisors = [d for d in range(128, L + 1, 128) if L % d == 0]
    valid = [d for d in divisors if d >= pad] or [L]   # halo carry needs tl >= pad
    under = [d for d in valid if d <= target]
    return max(under) if under else min(valid)


def _temporal_block_kernel(x_ref, w1_ref, b1_ref, w2_ref, b2_ref, *rest,
                           K, dil, pad, pad_al, tl, c_in, c_out, use_ds):
    """One (batch, time-tile) grid step of the fused TemporalBlock forward."""
    if use_ds:
        wd_ref, bd_ref, out_ref, xwin_ref, h1win_ref = rest
    else:
        out_ref, xwin_ref, h1win_ref = rest

    t = pl.program_id(1)              # time-tile index (sequential, "arbitrary")
    ci = xwin_ref.shape[0]            # channel-padded (multiple of 16)
    co = h1win_ref.shape[0]
    base = pad_al - pad               # first halo column inside the window

    # ---- reset windows at each sequence start (zero halo + padded rows) ----
    @pl.when(t == 0)
    def _():
        xwin_ref[...] = jnp.zeros((ci, pad_al + tl), jnp.bfloat16)
        h1win_ref[...] = jnp.zeros((co, pad_al + tl), jnp.bfloat16)

    if pad > 0:
        @pl.when(t > 0)
        def _():
            # causal halo for tile t = last `pad` columns of tile t-1's window
            xwin_ref[:, base:base + pad] = xwin_ref[:, pad_al + tl - pad:pad_al + tl]
            h1win_ref[:, base:base + pad] = h1win_ref[:, pad_al + tl - pad:pad_al + tl]

    # ---- stream the current x tile into the lane-aligned window (bf16) ----
    x_in = x_ref[...]                                   # (C_in, tl), input dtype
    x_bf = x_in.astype(jnp.bfloat16)
    xwin_ref[0:c_in, pad_al:pad_al + tl] = x_bf         # 128-aligned store

    def dilated_conv(win_ref, w_ref, b_ref, last_tap):
        # Tap K-1 reads the freshly written aligned slab / in-register operand;
        # earlier taps read shifted slices of the causal window.  K accumulating
        # MXU matmuls with an f32 accumulator (no concat temporaries).
        acc = jnp.dot(w_ref[K - 1], last_tap, preferred_element_type=jnp.float32)
        for k in range(K - 1):
            s = base + k * dil
            acc = acc + jnp.dot(w_ref[k], win_ref[:, s:s + tl],
                                preferred_element_type=jnp.float32)
        return acc + b_ref[...]

    x_slab = xwin_ref[:, pad_al:pad_al + tl]            # (ci, tl) bf16, padded rows = 0

    # conv1 -> relu     (nn.Dropout is identity at inference)
    h1 = jnp.maximum(dilated_conv(xwin_ref, w1_ref, b1_ref, x_slab), 0.0)
    h1_bf = h1.astype(jnp.bfloat16)                     # (co, tl); padded rows stay 0
    h1win_ref[:, pad_al:pad_al + tl] = h1_bf            # 128-aligned store

    # conv2 -> relu     (last tap comes straight from the in-register h1)
    h2 = jnp.maximum(dilated_conv(h1win_ref, w2_ref, b2_ref, h1_bf), 0.0)

    # ---- residual: 1x1 downsample conv, or identity when C_in == C_out ----
    if use_ds:
        res = (jnp.dot(wd_ref[...], x_slab, preferred_element_type=jnp.float32)
               + bd_ref[...])[0:c_out]
    else:
        res = x_in.astype(jnp.float32)

    out_ref[...] = jnp.maximum(h2[0:c_out] + res, 0.0).astype(out_ref.dtype)


def temporal_block(x, w1, b1, w2, b2, wd=None, bd=None, *,
                   kernel_size, dilation, padding, time_tile=512,
                   out_dtype=None):
    """Fused TemporalBlock forward (inference, stride=1).

    x  : (N, C_in, L)
    w1 : (C_out, C_in, K)   effective conv1 weight (weight_norm already applied)
    w2 : (C_out, C_out, K)  effective conv2 weight
    b1, b2 : (C_out,)
    wd : (C_out, C_in) or None (identity residual; requires C_in == C_out)
    bd : (C_out,) or None
    out_dtype : output dtype (default x.dtype; pass jnp.bfloat16 to halve writeback)
    Returns (N, C_out, L).
    """
    N, C_in, L = x.shape
    K = kernel_size
    C_out = w1.shape[0]
    if padding != (K - 1) * dilation:
        raise ValueError("TemporalBlock requires padding == (kernel_size-1)*dilation")
    use_ds = wd is not None
    if not use_ds and C_in != C_out:
        raise ValueError("identity residual requires C_in == C_out")
    if out_dtype is None:
        out_dtype = x.dtype

    pad = padding
    tl = _choose_time_tile(L, pad, time_tile)
    n_t = L // tl
    assert n_t * tl == L
    pad_al = _round_up(pad, 128) if pad > 0 else 0

    # Channel padding (bf16 sublane tile 16) only in the tiny weights / windows.
    ci = _round_up(C_in, 16)
    co = _round_up(C_out, 16)

    def pack(w, co_p, ci_p):
        # (C_out, C_in_like, K) -> (K, co_p, ci_p) bf16, zero-padded channels.
        o, i, k = w.shape
        wp = jnp.zeros((k, co_p, ci_p), jnp.bfloat16)
        return wp.at[:, :o, :i].set(jnp.transpose(w, (2, 0, 1)).astype(jnp.bfloat16))

    w1p = pack(w1, co, ci)                                    # (K, co, ci)
    w2p = pack(w2, co, co)                                    # (K, co, co)
    b1p = jnp.zeros((co, 1), jnp.float32).at[:C_out, 0].set(b1.astype(jnp.float32))
    b2p = jnp.zeros((co, 1), jnp.float32).at[:C_out, 0].set(b2.astype(jnp.float32))

    args = [x, w1p, b1p, w2p, b2p]
    # NOTE: the weight/bias index_maps are constant, so they are not re-DMA'd
    # across grid steps (pl.Buffered(1) would additionally drop their second
    # VMEM buffer; left at the default for compatibility).
    in_specs = [
        pl.BlockSpec((None, C_in, tl), lambda n, t: (n, 0, t)),   # x, unpadded stream
        pl.BlockSpec((K, co, ci), lambda n, t: (0, 0, 0)),        # conv1 taps
        pl.BlockSpec((co, 1), lambda n, t: (0, 0)),               # b1
        pl.BlockSpec((K, co, co), lambda n, t: (0, 0, 0)),        # conv2 taps
        pl.BlockSpec((co, 1), lambda n, t: (0, 0)),               # b2
    ]
    if use_ds:
        wdp = jnp.zeros((co, ci), jnp.bfloat16).at[:C_out, :C_in].set(
            wd.astype(jnp.bfloat16))
        bdp = jnp.zeros((co, 1), jnp.float32).at[:C_out, 0].set(bd.astype(jnp.float32))
        args += [wdp, bdp]
        in_specs += [pl.BlockSpec((co, ci), lambda n, t: (0, 0)),
                     pl.BlockSpec((co, 1), lambda n, t: (0, 0))]

    kernel = functools.partial(_temporal_block_kernel, K=K, dil=dilation,
                               pad=pad, pad_al=pad_al, tl=tl,
                               c_in=C_in, c_out=C_out, use_ds=use_ds)

    return pl.pallas_call(
        kernel,
        out_shape=jax.ShapeDtypeStruct((N, C_out, L), out_dtype),
        grid_spec=pltpu.PrefetchScalarGridSpec(
            num_scalar_prefetch=0,
            grid=(N, n_t),
            in_specs=in_specs,
            out_specs=pl.BlockSpec((None, C_out, tl), lambda n, t: (n, 0, t)),
            scratch_shapes=[
                pltpu.VMEM((ci, pad_al + tl), jnp.bfloat16),   # x causal window
                pltpu.VMEM((co, pad_al + tl), jnp.bfloat16),   # h1 causal window
            ]),
        compiler_params=pltpu.CompilerParams(
            # batch tiles are independent (megacore-shardable); time tiles carry
            # the causal halo in scratch, so they must stay sequential.
            dimension_semantics=("parallel", "arbitrary"),
            vmem_limit_bytes=32 * 1024 * 1024),
    )(*args)


# ----------------------------- test harness ---------------------------------

def _weight_norm_effective(v):
    """PyTorch weight_norm: W = g * v / ||v|| over dims (1,2,3); g init = ||v||."""
    norm = jnp.sqrt(jnp.sum(v ** 2, axis=(1, 2, 3), keepdims=True))
    g = norm
    return g * v / norm                                        # == v at init


def _reference_forward(x, w1, b1, w2, b2, wd, bd, dilation, padding):
    """Pure-JAX reference mirroring the kernel's bf16-operand / f32-acc numerics."""
    bf, f32 = jnp.bfloat16, jnp.float32
    xb = x.astype(bf).astype(f32)          # conv / downsample operands see bf16 x
    w1b = w1.astype(bf).astype(f32)
    w2b = w2.astype(bf).astype(f32)

    def causal_conv(h, w, b):
        hp = jnp.pad(h, ((0, 0), (0, 0), (padding, 0)))
        y = jax.lax.conv_general_dilated(
            hp, w, window_strides=(1,), padding="VALID",
            rhs_dilation=(dilation,),
            dimension_numbers=("NCH", "OIH", "NCH"))
        return y + b.astype(f32)[None, :, None]

    h1 = jnp.maximum(causal_conv(xb, w1b, b1), 0.0)
    h1 = h1.astype(bf).astype(f32)         # kernel keeps h1 in bf16 VMEM
    h2 = jnp.maximum(causal_conv(h1, w2b, b2), 0.0)
    if wd is None:
        res = x.astype(f32)                # identity path uses full-precision x
    else:
        res = jnp.einsum("oc,ncl->nol", wd.astype(bf).astype(f32), xb) \
            + bd.astype(f32)[None, :, None]
    return jnp.maximum(h2 + res, 0.0)


if __name__ == "__main__":
    key = jax.random.PRNGKey(0)
    ks = jax.random.split(key, 20)

    K, stride = 3, 1
    assert stride == 1  # standard TCN setting; kernel implements stride=1

    # ---- case 1: n_inputs != n_outputs -> 1x1 downsample residual ----
    dilation = 1
    padding = (K - 1) * dilation
    N, C_in, C_out, L = 2, 4, 8, 16
    x = jax.random.normal(ks[0], (N, C_in, L), jnp.float32)
    v1 = 0.01 * jax.random.normal(ks[1], (C_out, C_in, 1, K), jnp.float32)
    v2 = 0.01 * jax.random.normal(ks[2], (C_out, C_out, 1, K), jnp.float32)
    w1 = _weight_norm_effective(v1)[:, :, 0, :]         # (C_out, C_in, K)
    w2 = _weight_norm_effective(v2)[:, :, 0, :]
    b1 = 0.01 * jax.random.normal(ks[3], (C_out,), jnp.float32)
    b2 = 0.01 * jax.random.normal(ks[4], (C_out,), jnp.float32)
    wd = 0.01 * jax.random.normal(ks[5], (C_out, C_in), jnp.float32)
    bd = 0.01 * jax.random.normal(ks[6], (C_out,), jnp.float32)

    out = temporal_block(x, w1, b1, w2, b2, wd, bd,
                         kernel_size=K, dilation=dilation, padding=padding)
    out = jax.block_until_ready(out)
    ref = _reference_forward(x, w1, b1, w2, b2, wd, bd, dilation, padding)
    assert out.shape == (N, C_out, L)
    assert jnp.allclose(out, ref, atol=1e-4, rtol=1e-3), \
        float(jnp.max(jnp.abs(out - ref)))

    # ---- case 2: n_inputs == n_outputs -> identity residual (no downsample) ----
    C = 8
    x2 = jax.random.normal(ks[7], (N, C, L), jnp.float32)
    v1b = 0.01 * jax.random.normal(ks[8], (C, C, 1, K), jnp.float32)
    v2b = 0.01 * jax.random.normal(ks[9], (C, C, 1, K), jnp.float32)
    w1b = _weight_norm_effective(v1b)[:, :, 0, :]
    w2b = _weight_norm_effective(v2b)[:, :, 0, :]
    b1b = 0.01 * jax.random.normal(ks[10], (C,), jnp.float32)
    b2b = 0.01 * jax.random.normal(ks[11], (C,), jnp.float32)

    out2 = temporal_block(x2, w1b, b1b, w2b, b2b, None, None,
                          kernel_size=K, dilation=dilation, padding=padding)
    out2 = jax.block_until_ready(out2)
    ref2 = _reference_forward(x2, w1b, b1b, w2b, b2b, None, None,
                              dilation, padding)
    assert out2.shape == (N, C, L)
    assert jnp.allclose(out2, ref2, atol=1e-4, rtol=1e-3), \
        float(jnp.max(jnp.abs(out2 - ref2)))

    # ---- case 3: multi-tile time axis + dilation 2 -> exercises halo carry ----
    dilation3 = 2
    padding3 = (K - 1) * dilation3
    L3 = 256
    x3 = jax.random.normal(ks[12], (N, C_in, L3), jnp.float32)
    v13 = 0.01 * jax.random.normal(ks[13], (C_out, C_in, 1, K), jnp.float32)
    v23 = 0.01 * jax.random.normal(ks[14], (C_out, C_out, 1, K), jnp.float32)
    w13 = _weight_norm_effective(v13)[:, :, 0, :]
    w23 = _weight_norm_effective(v23)[:, :, 0, :]
    b13 = 0.01 * jax.random.normal(ks[15], (C_out,), jnp.float32)
    b23 = 0.01 * jax.random.normal(ks[16], (C_out,), jnp.float32)
    wd3 = 0.01 * jax.random.normal(ks[17], (C_out, C_in), jnp.float32)
    bd3 = 0.01 * jax.random.normal(ks[18], (C_out,), jnp.float32)

    out3 = temporal_block(x3, w13, b13, w23, b23, wd3, bd3,
                          kernel_size=K, dilation=dilation3, padding=padding3,
                          time_tile=128)                 # -> 2 time tiles of 128
    out3 = jax.block_until_ready(out3)
    ref3 = _reference_forward(x3, w13, b13, w23, b23, wd3, bd3,
                              dilation3, padding3)
    assert out3.shape == (N, C_out, L3)
    assert jnp.allclose(out3, ref3, atol=1e-4, rtol=1e-3), \
        float(jnp.max(jnp.abs(out3 - ref3)))

    print("KERNEL_OK")
</pallas_src>

<mosaic_0001>
module attributes {stable_mosaic.version = 11 : i64} {
  func.func @_temporal_block_kernel(%arg0: i32, %arg1: i32, %arg2: memref<1x4x16xf32, #tpu.memory_space<vmem>>, %arg3: memref<3x16x16xbf16, #tpu.memory_space<vmem>>, %arg4: memref<16x1xf32, #tpu.memory_space<vmem>>, %arg5: memref<3x16x16xbf16, #tpu.memory_space<vmem>>, %arg6: memref<16x1xf32, #tpu.memory_space<vmem>>, %arg7: memref<16x16xbf16, #tpu.memory_space<vmem>>, %arg8: memref<16x1xf32, #tpu.memory_space<vmem>>, %arg9: memref<1x8x16xf32, #tpu.memory_space<vmem>>, %arg10: memref<16x144xbf16, #tpu.memory_space<vmem>>, %arg11: memref<16x144xbf16, #tpu.memory_space<vmem>>) attributes {dimension_semantics = [#tpu.dimension_semantics<parallel>, #tpu.dimension_semantics<arbitrary>], iteration_bounds = array<i64: 2, 1>, scalar_prefetch = 0 : i64, scratch_operands = 2 : i64, tpu.core_type = #tpu.core_type<tc>, window_params = [{transform_indices = @transform_0, window_bounds = array<i64: 1, 4, 16>}, {pipeline_mode = #tpu.pipeline_mode<synchronous>, transform_indices = @transform_1, window_bounds = array<i64: 3, 16, 16>}, {pipeline_mode = #tpu.pipeline_mode<synchronous>, transform_indices = @transform_2, window_bounds = array<i64: 16, 1>}, {pipeline_mode = #tpu.pipeline_mode<synchronous>, transform_indices = @transform_3, window_bounds = array<i64: 3, 16, 16>}, {pipeline_mode = #tpu.pipeline_mode<synchronous>, transform_indices = @transform_4, window_bounds = array<i64: 16, 1>}, {pipeline_mode = #tpu.pipeline_mode<synchronous>, transform_indices = @transform_5, window_bounds = array<i64: 16, 16>}, {pipeline_mode = #tpu.pipeline_mode<synchronous>, transform_indices = @transform_6, window_bounds = array<i64: 16, 1>}, {transform_indices = @transform_7, window_bounds = array<i64: 1, 8, 16>}]} {
    %c0_i32 = arith.constant 0 : i32
    %0 = arith.cmpi eq, %arg1, %c0_i32 : i32
    %1 = arith.extui %0 : i1 to i32
    %c0_i32_0 = arith.constant 0 : i32
    %2 = arith.cmpi ne, %1, %c0_i32_0 : i32
    scf.if %2 {
      %cst_52 = arith.constant 0.000000e+00 : bf16
      %62 = vector.broadcast %cst_52 : bf16 to vector<16x144xbf16>
      %c0_53 = arith.constant 0 : index
      %c0_54 = arith.constant 0 : index
      %63 = vector.load %arg10[%c0_53, %c0_54] : memref<16x144xbf16, #tpu.memory_space<vmem>>, vector<16x144xbf16>
      tpu.vector_store %arg10[%c0_53, %c0_54], %62 {strides = array<i32>} : memref<16x144xbf16, #tpu.memory_space<vmem>>, vector<16x144xbf16>,
      %cst_55 = arith.constant 0.000000e+00 : bf16
      %64 = vector.broadcast %cst_55 : bf16 to vector<16x144xbf16>
      %c0_56 = arith.constant 0 : index
      %c0_57 = arith.constant 0 : index
      %65 = vector.load %arg11[%c0_56, %c0_57] : memref<16x144xbf16, #tpu.memory_space<vmem>>, vector<16x144xbf16>
      tpu.vector_store %arg11[%c0_56, %c0_57], %64 {strides = array<i32>} : memref<16x144xbf16, #tpu.memory_space<vmem>>, vector<16x144xbf16>,
    } else {
    }
    %c0_i32_1 = arith.constant 0 : i32
    %3 = arith.cmpi sgt, %arg1, %c0_i32_1 : i32
    %4 = arith.extui %3 : i1 to i32
    %c0_i32_2 = arith.constant 0 : i32
    %5 = arith.cmpi ne, %4, %c0_i32_2 : i32
    scf.if %5 {
      %c0_52 = arith.constant 0 : index
      %c142 = arith.constant 142 : index
      %62 = vector.load %arg10[%c0_52, %c142] : memref<16x144xbf16, #tpu.memory_space<vmem>>, vector<16x2xbf16>
      %c0_53 = arith.constant 0 : index
      %c126_54 = arith.constant 126 : index
      %63 = vector.load %arg10[%c0_53, %c126_54] : memref<16x144xbf16, #tpu.memory_space<vmem>>, vector<16x2xbf16>
      tpu.vector_store %arg10[%c0_53, %c126_54], %62 {strides = array<i32>} : memref<16x144xbf16, #tpu.memory_space<vmem>>, vector<16x2xbf16>,
      %c0_55 = arith.constant 0 : index
      %c142_56 = arith.constant 142 : index
      %64 = vector.load %arg11[%c0_55, %c142_56] : memref<16x144xbf16, #tpu.memory_space<vmem>>, vector<16x2xbf16>
      %c0_57 = arith.constant 0 : index
      %c126_58 = arith.constant 126 : index
      %65 = vector.load %arg11[%c0_57, %c126_58] : memref<16x144xbf16, #tpu.memory_space<vmem>>, vector<16x2xbf16>
      tpu.vector_store %arg11[%c0_57, %c126_58], %64 {strides = array<i32>} : memref<16x144xbf16, #tpu.memory_space<vmem>>, vector<16x2xbf16>,
    } else {
    }
    %c0 = arith.constant 0 : index
    %c0_3 = arith.constant 0 : index
    %c0_4 = arith.constant 0 : index
    %6 = vector.load %arg2[%c0, %c0_3, %c0_4] : memref<1x4x16xf32, #tpu.memory_space<vmem>>, vector<1x4x16xf32>
    %7 = vector.shape_cast %6 : vector<1x4x16xf32> to vector<4x16xf32>
    %8 = arith.truncf %7 : vector<4x16xf32> to vector<4x16xbf16>
    %c0_5 = arith.constant 0 : index
    %c128 = arith.constant 128 : index
    %9 = vector.load %arg10[%c0_5, %c128] : memref<16x144xbf16, #tpu.memory_space<vmem>>, vector<4x16xbf16>
    tpu.vector_store %arg10[%c0_5, %c128], %8 {strides = array<i32>} : memref<16x144xbf16, #tpu.memory_space<vmem>>, vector<4x16xbf16>,
    %c0_6 = arith.constant 0 : index
    %c128_7 = arith.constant 128 : index
    %10 = vector.load %arg10[%c0_6, %c128_7] : memref<16x144xbf16, #tpu.memory_space<vmem>>, vector<16x16xbf16>
    %c2 = arith.constant 2 : index
    %c0_8 = arith.constant 0 : index
    %c0_9 = arith.constant 0 : index
    %11 = vector.load %arg3[%c2, %c0_8, %c0_9] : memref<3x16x16xbf16, #tpu.memory_space<vmem>>, vector<1x16x16xbf16>
    %12 = vector.shape_cast %11 : vector<1x16x16xbf16> to vector<16x16xbf16>
    %cst = arith.constant dense<0.000000e+00> : vector<16x16xf32>
    %13 = tpu.matmul %12, %10, %cst {dimension_numbers = #tpu.dot_dimension_numbers<[1], [0], [0], [1], [0, 0, 1, 1], [], []>} : vector<16x16xbf16>, vector<16x16xbf16>, vector<16x16xf32> -> vector<16x16xf32>
    %c0_10 = arith.constant 0 : index
    %c0_11 = arith.constant 0 : index
    %c0_12 = arith.constant 0 : index
    %14 = vector.load %arg3[%c0_10, %c0_11, %c0_12] : memref<3x16x16xbf16, #tpu.memory_space<vmem>>, vector<1x16x16xbf16>
    %15 = vector.shape_cast %14 : vector<1x16x16xbf16> to vector<16x16xbf16>
    %c0_13 = arith.constant 0 : index
    %c126 = arith.constant 126 : index
    %16 = vector.load %arg10[%c0_13, %c126] : memref<16x144xbf16, #tpu.memory_space<vmem>>, vector<16x16xbf16>
    %cst_14 = arith.constant dense<0.000000e+00> : vector<16x16xf32>
    %17 = tpu.matmul %15, %16, %cst_14 {dimension_numbers = #tpu.dot_dimension_numbers<[1], [0], [0], [1], [0, 0, 1, 1], [], []>} : vector<16x16xbf16>, vector<16x16xbf16>, vector<16x16xf32> -> vector<16x16xf32>
    %18 = arith.addf %13, %17 : vector<16x16xf32>
    %c1 = arith.constant 1 : index
    %c0_15 = arith.constant 0 : index
    %c0_16 = arith.constant 0 : index
    %19 = vector.load %arg3[%c1, %c0_15, %c0_16] : memref<3x16x16xbf16, #tpu.memory_space<vmem>>, vector<1x16x16xbf16>
    %20 = vector.shape_cast %19 : vector<1x16x16xbf16> to vector<16x16xbf16>
    %c0_17 = arith.constant 0 : index
    %c127 = arith.constant 127 : index
    %21 = vector.load %arg10[%c0_17, %c127] : memref<16x144xbf16, #tpu.memory_space<vmem>>, vector<16x16xbf16>
    %cst_18 = arith.constant dense<0.000000e+00> : vector<16x16xf32>
    %22 = tpu.matmul %20, %21, %cst_18 {dimension_numbers = #tpu.dot_dimension_numbers<[1], [0], [0], [1], [0, 0, 1, 1], [], []>} : vector<16x16xbf16>, vector<16x16xbf16>, vector<16x16xf32> -> vector<16x16xf32>
    %23 = arith.addf %18, %22 : vector<16x16xf32>
    %c0_19 = arith.constant 0 : index
    %c0_20 = arith.constant 0 : index
    %24 = vector.load %arg4[%c0_19, %c0_20] : memref<16x1xf32, #tpu.memory_space<vmem>>, vector<16x1xf32>
    %25 = vector.broadcast %24 : vector<16x1xf32> to vector<16x16xf32>
    %26 = arith.addf %23, %25 : vector<16x16xf32>
    %cst_21 = arith.constant 0.000000e+00 : f32
    %27 = vector.broadcast %cst_21 : f32 to vector<16x16xf32>
    %28 = arith.maximumf %26, %27 : vector<16x16xf32>
    %29 = arith.truncf %28 : vector<16x16xf32> to vector<16x16xbf16>
    %c0_22 = arith.constant 0 : index
    %c128_23 = arith.constant 128 : index
    %30 = vector.load %arg11[%c0_22, %c128_23] : memref<16x144xbf16, #tpu.memory_space<vmem>>, vector<16x16xbf16>
    tpu.vector_store %arg11[%c0_22, %c128_23], %29 {strides = array<i32>} : memref<16x144xbf16, #tpu.memory_space<vmem>>, vector<16x16xbf16>,
    %c2_24 = arith.constant 2 : index
    %c0_25 = arith.constant 0 : index
    %c0_26 = arith.constant 0 : index
    %31 = vector.load %arg5[%c2_24, %c0_25, %c0_26] : memref<3x16x16xbf16, #tpu.memory_space<vmem>>, vector<1x16x16xbf16>
    %32 = vector.shape_cast %31 : vector<1x16x16xbf16> to vector<16x16xbf16>
    %cst_27 = arith.constant dense<0.000000e+00> : vector<16x16xf32>
    %33 = tpu.matmul %32, %29, %cst_27 {dimension_numbers = #tpu.dot_dimension_numbers<[1], [0], [0], [1], [0, 0, 1, 1], [], []>} : vector<16x16xbf16>, vector<16x16xbf16>, vector<16x16xf32> -> vector<16x16xf32>
    %c0_28 = arith.constant 0 : index
    %c0_29 = arith.constant 0 : index
    %c0_30 = arith.constant 0 : index
    %34 = vector.load %arg5[%c0_28, %c0_29, %c0_30] : memref<3x16x16xbf16, #tpu.memory_space<vmem>>, vector<1x16x16xbf16>
    %35 = vector.shape_cast %34 : vector<1x16x16xbf16> to vector<16x16xbf16>
    %c0_31 = arith.constant 0 : index
    %c126_32 = arith.constant 126 : index
    %36 = vector.load %arg11[%c0_31, %c126_32] : memref<16x144xbf16, #tpu.memory_space<vmem>>, vector<16x16xbf16>
    %cst_33 = arith.constant dense<0.000000e+00> : vector<16x16xf32>
    %37 = tpu.matmul %35, %36, %cst_33 {dimension_numbers = #tpu.dot_dimension_numbers<[1], [0], [0], [1], [0, 0, 1, 1], [], []>} : vector<16x16xbf16>, vector<16x16xbf16>, vector<16x16xf32> -> vector<16x16xf32>
    %38 = arith.addf %33, %37 : vector<16x16xf32>
    %c1_34 = arith.constant 1 : index
    %c0_35 = arith.constant 0 : index
    %c0_36 = arith.constant 0 : index
    %39 = vector.load %arg5[%c1_34, %c0_35, %c0_36] : memref<3x16x16xbf16, #tpu.memory_space<vmem>>, vector<1x16x16xbf16>
    %40 = vector.shape_cast %39 : vector<1x16x16xbf16> to vector<16x16xbf16>
    %c0_37 = arith.constant 0 : index
    %c127_38 = arith.constant 127 : index
    %41 = vector.load %arg11[%c0_37, %c127_38] : memref<16x144xbf16, #tpu.memory_space<vmem>>, vector<16x16xbf16>
    %cst_39 = arith.constant dense<0.000000e+00> : vector<16x16xf32>
    %42 = tpu.matmul %40, %41, %cst_39 {dimension_numbers = #tpu.dot_dimension_numbers<[1], [0], [0], [1], [0, 0, 1, 1], [], []>} : vector<16x16xbf16>, vector<16x16xbf16>, vector<16x16xf32> -> vector<16x16xf32>
    %43 = arith.addf %38, %42 : vector<16x16xf32>
    %c0_40 = arith.constant 0 : index
    %c0_41 = arith.constant 0 : index
    %44 = vector.load %arg6[%c0_40, %c0_41] : memref<16x1xf32, #tpu.memory_space<vmem>>, vector<16x1xf32>
    %45 = vector.broadcast %44 : vector<16x1xf32> to vector<16x16xf32>
    %46 = arith.addf %43, %45 : vector<16x16xf32>
    %cst_42 = arith.constant 0.000000e+00 : f32
    %47 = vector.broadcast %cst_42 : f32 to vector<16x16xf32>
    %48 = arith.maximumf %46, %47 : vector<16x16xf32>
    %c0_43 = arith.constant 0 : index
    %c0_44 = arith.constant 0 : index
    %49 = vector.load %arg7[%c0_43, %c0_44] : memref<16x16xbf16, #tpu.memory_space<vmem>>, vector<16x16xbf16>
    %cst_45 = arith.constant dense<0.000000e+00> : vector<16x16xf32>
    %50 = tpu.matmul %49, %10, %cst_45 {dimension_numbers = #tpu.dot_dimension_numbers<[1], [0], [0], [1], [0, 0, 1, 1], [], []>} : vector<16x16xbf16>, vector<16x16xbf16>, vector<16x16xf32> -> vector<16x16xf32>
    %c0_46 = arith.constant 0 : index
    %c0_47 = arith.constant 0 : index
    %51 = vector.load %arg8[%c0_46, %c0_47] : memref<16x1xf32, #tpu.memory_space<vmem>>, vector<16x1xf32>
    %52 = vector.broadcast %51 : vector<16x1xf32> to vector<16x16xf32>
    %53 = arith.addf %50, %52 : vector<16x16xf32>
    %54 = vector.extract_strided_slice %53 {offsets = [0, 0], sizes = [8, 16], strides = [1, 1]} : vector<16x16xf32> to vector<8x16xf32>
    %55 = vector.extract_strided_slice %48 {offsets = [0, 0], sizes = [8, 16], strides = [1, 1]} : vector<16x16xf32> to vector<8x16xf32>
    %56 = arith.addf %55, %54 : vector<8x16xf32>
    %cst_48 = arith.constant 0.000000e+00 : f32
    %57 = vector.broadcast %cst_48 : f32 to vector<8x16xf32>
    %58 = arith.maximumf %56, %57 : vector<8x16xf32>
    %c0_49 = arith.constant 0 : index
    %c0_50 = arith.constant 0 : index
    %c0_51 = arith.constant 0 : index
    %59 = vector.load %arg9[%c0_49, %c0_50, %c0_51] : memref<1x8x16xf32, #tpu.memory_space<vmem>>, vector<1x8x16xf32>
    %60 = vector.shape_cast %59 : vector<1x8x16xf32> to vector<8x16xf32>
    %61 = vector.shape_cast %58 : vector<8x16xf32> to vector<1x8x16xf32>
    tpu.vector_store %arg9[%c0_49, %c0_50, %c0_51], %61 {strides = array<i32>} : memref<1x8x16xf32, #tpu.memory_space<vmem>>, vector<1x8x16xf32>,
    return
  }
  func.func @transform_0(%arg0: i32, %arg1: i32) -> (i32, i32, i32) {
    %c0_i32 = arith.constant 0 : i32
    %c0_i32_0 = arith.constant 0 : i32
    return %arg0, %c0_i32, %arg1 : i32, i32, i32
  }
  func.func @transform_1(%arg0: i32, %arg1: i32) -> (i32, i32, i32) {
    %c0_i32 = arith.constant 0 : i32
    %c0_i32_0 = arith.constant 0 : i32
    %c0_i32_1 = arith.constant 0 : i32
    %c0_i32_2 = arith.constant 0 : i32
    return %c0_i32, %c0_i32_0, %c0_i32_1 : i32, i32, i32
  }
  func.func @transform_2(%arg0: i32, %arg1: i32) -> (i32, i32) {
    %c0_i32 = arith.constant 0 : i32
    %c0_i32_0 = arith.constant 0 : i32
    %c0_i32_1 = arith.constant 0 : i32
    return %c0_i32, %c0_i32_0 : i32, i32
  }
  func.func @transform_3(%arg0: i32, %arg1: i32) -> (i32, i32, i32) {
    %c0_i32 = arith.constant 0 : i32
    %c0_i32_0 = arith.constant 0 : i32
    %c0_i32_1 = arith.constant 0 : i32
    %c0_i32_2 = arith.constant 0 : i32
    return %c0_i32, %c0_i32_0, %c0_i32_1 : i32, i32, i32
  }
  func.func @transform_4(%arg0: i32, %arg1: i32) -> (i32, i32) {
    %c0_i32 = arith.constant 0 : i32
    %c0_i32_0 = arith.constant 0 : i32
    %c0_i32_1 = arith.constant 0 : i32
    return %c0_i32, %c0_i32_0 : i32, i32
  }
  func.func @transform_5(%arg0: i32, %arg1: i32) -> (i32, i32) {
    %c0_i32 = arith.constant 0 : i32
    %c0_i32_0 = arith.constant 0 : i32
    %c0_i32_1 = arith.constant 0 : i32
    return %c0_i32, %c0_i32_0 : i32, i32
  }
  func.func @transform_6(%arg0: i32, %arg1: i32) -> (i32, i32) {
    %c0_i32 = arith.constant 0 : i32
    %c0_i32_0 = arith.constant 0 : i32
    %c0_i32_1 = arith.constant 0 : i32
    return %c0_i32, %c0_i32_0 : i32, i32
  }
  func.func @transform_7(%arg0: i32, %arg1: i32) -> (i32, i32, i32) {
    %c0_i32 = arith.constant 0 : i32
    %c0_i32_0 = arith.constant 0 : i32
    return %arg0, %c0_i32, %arg1 : i32, i32, i32
  }
}

</mosaic_0001>

<llo_original>
// kernel: tpu_custom_call.1
$region0: #{tpu_custom_call.1}
  #allocation0 [shape = 'u32[]', space=smem, size = 0x4, offset = 0x4, fixed_abs, tag = 'smem constant byte address 0x4 - core index']
  #allocation1 [shape = 'u32[144,128]{1,0:T(1,128)}', space=vmem, size = 0x12000, scoped, tag = 'internal scratch']
  #allocation2 [shape = 'bf16[16,144]{1,0:T(16,128)(2,1)}', space=vmem, size = 0x2000, scoped, tag = 'scratch operand']
  #allocation3 [shape = 'bf16[16,144]{1,0:T(16,128)(2,1)}', space=vmem, size = 0x2000, scoped, tag = 'scratch operand']
  %s0 = inlined_call_operand.hbm [shape: f32[2,4,16], index: 0, kind: input, shape index: {}]
  %s1 = inlined_call_operand.vmem [shape: bf16[3,16,16], index: 1, kind: input, shape index: {}]
  %s2 = inlined_call_operand.vmem [shape: f32[16,1], index: 2, kind: input, shape index: {}]
  %s3 = inlined_call_operand.vmem [shape: bf16[3,16,16], index: 3, kind: input, shape index: {}]
  %s4 = inlined_call_operand.vmem [shape: f32[16,1], index: 4, kind: input, shape index: {}]
  %s5 = inlined_call_operand.vmem [shape: bf16[16,16], index: 5, kind: input, shape index: {}]
  %s6 = inlined_call_operand.vmem [shape: f32[16,1], index: 6, kind: input, shape index: {}]
  %s7 = inlined_call_operand.hbm [shape: f32[2,8,16], index: 7, kind: output, shape index: {}]
  %s8 = sld [smem:[#allocation0]]
  $region73: #{tpu_custom_call.1} parent=0
    _
  %s10 = ssub.s32 1, %s8
  %s11 = scalar_select 0, %s10, %s8
  $region1: #{tpu_custom_call.1} parent=0
    #allocation4 [shape = 'u8[4096]{0}', space=vmem, size = 0x1000, scoped, tag = 'input window, operand 0']
    #allocation5 [shape = 's32[2]{0}', space=sflag, size = 0x8, scoped, tag = 'scoped memory for tpu_custom_call.1']
    #allocation6 [shape = 's32[2]{0}', space=sflag, size = 0x8, scoped, tag = 'scoped memory for tpu_custom_call.1']
    #allocation7 [shape = 'u8[8192]{0}', space=vmem, size = 0x2000, scoped, tag = 'output window, operand 0']
    %12 = vsyncpa [#allocation5], 0
    %s13 = scalar_lea.sflag [#allocation5], 1
    %14 = vsyncpa %s13, 0
    %15 = vsyncpa [#allocation6], 0
    %s16 = scalar_lea.sflag [#allocation6], 1
    %17 = vsyncpa %s16, 0
    loop: start=0, step=1, limit=4
    $region2: #{tpu_custom_call.1} parent=1 // loop_pre_header
      _
    $region3: #{tpu_custom_call.1} parent=1 // loop_header
      %s19 = sphi 0, %s23
      %p20 = scmp.ge.s32.totalorder %s19, 4
      %s26 = sphi 0, %s38
      %s27 = sphi 0, %s34
      %s28 = sphi 0, %s26
      %s29 = sphi 0, %s27
      %s30 = sphi 0, %s28
      %s31 = sphi 0, %s29
      %s43 = sphi 0, %s45
      %s46 = sphi 0, %s43
      %s47 = sphi 0, %s46
      %s63 = sphi 0, %s47
      %s67 = sphi 0, %s67
      %s69 = sphi 0, %s67
      %s70 = sphi 0, %s69
      %s84 = sphi 0, %s70
      %s88 = sphi 0, %s88
      %s90 = sphi 0, %s88
      %s91 = sphi 0, %s90
      %s105 = sphi 0, %s91
      %s109 = sphi 0, %s109
      %s111 = sphi 0, %s109
      %s112 = sphi 0, %s111
      %s126 = sphi 0, %s112
      %s130 = sphi 0, %s130
      %s132 = sphi 0, %s130
      %s133 = sphi 0, %s132
      %s147 = sphi 0, %s133
      %s151 = sphi 0, %s151
      %s153 = sphi 0, %s151
      %s154 = sphi 0, %s153
      %s168 = sphi 0, %s154
      %s172 = sphi 0, %s172
      %s174 = sphi 0, %s172
      %s175 = sphi 0, %s174
      %s189 = sphi 0, %s175
      %s197 = sphi 0, %s199
      %s200 = sphi 0, %s197
      %s201 = sphi 0, %s200
      %s217 = sphi 0, %s201
    $region4: #{tpu_custom_call.1} parent=1 // loop_header_branch
      %22 = sbr.rel (%p20) target = $region8
    $region5: #{tpu_custom_call.1} parent=1 // loop_body
      %s24 = ssub.s32 %s19, 1
      %s25 = ssub.s32 %s19, 2
      %s32 = sadd.s32 1, %s27
      %p33 = scmp.ge.s32.totalorder %s32, 1
      %s34 = scalar_select %p33, 0, %s32
      %s35 = sadd.s32 1, %s26
      %s36 = scalar_select %p33, %s35, %s26
      %p37 = scmp.ge.s32.totalorder %s36, 2
      %s38 = scalar_select %p37, 0, %s36
      %s39 = ssub.s32 %s26, %s38
      %s40 = ssub.s32 %s27, %s34
      %s41 = sor.u32 %s39, %s40
      %p42 = scmp.eq.s32.totalorder %s41, 0
      %s44 = sadd.s32 %s43, 1
      %s45 = scalar_select %p42, %s43, %s44
      %p48 = pneg %p42
      %p49 = scmp.eq.s32.totalorder %s19, 1
      %p50 = por %p48, %p49
      %p51 = scmp.ne.s32.totalorder %s43, %s46
      %p52 = scmp.eq.s32.totalorder %s19, 0
      %p53 = por %p51, %p52
      %p54 = scmp.ne.s32.totalorder %s43, %s46
      %p55 = scmp.eq.s32.totalorder %s24, 1
      %p56 = por %p54, %p55
      %p57 = scmp.ne.s32.totalorder %s46, %s47
      %p58 = scmp.eq.s32.totalorder %s24, 0
      %p59 = por %p57, %p58
      %p60 = scmp.ne.s32.totalorder %s46, %s47
      %p61 = scmp.eq.s32.totalorder %s25, 1
      %p62 = por %p60, %p61
      %p64 = scmp.ne.s32.totalorder %s47, %s63
      %p65 = scmp.eq.s32.totalorder %s25, 0
      %p66 = por %p64, %p65
      %s68 = sadd.s32 %s67, 1
      %p71 = scmp.eq.s32.totalorder %s19, 1
      %p72 = scmp.ne.s32.totalorder %s67, %s69
      %p73 = scmp.eq.s32.totalorder %s19, 0
      %p74 = por %p72, %p73
      %p75 = scmp.ne.s32.totalorder %s67, %s69
      %p76 = scmp.eq.s32.totalorder %s24, 1
      %p77 = por %p75, %p76
      %p78 = scmp.ne.s32.totalorder %s69, %s70
      %p79 = scmp.eq.s32.totalorder %s24, 0
      %p80 = por %p78, %p79
      %p81 = scmp.ne.s32.totalorder %s69, %s70
      %p82 = scmp.eq.s32.totalorder %s25, 1
      %p83 = por %p81, %p82
      %p85 = scmp.ne.s32.totalorder %s70, %s84
      %p86 = scmp.eq.s32.totalorder %s25, 0
      %p87 = por %p85, %p86
      %s89 = sadd.s32 %s88, 1
      %p92 = scmp.eq.s32.totalorder %s19, 1
      %p93 = scmp.ne.s32.totalorder %s88, %s90
      %p94 = scmp.eq.s32.totalorder %s19, 0
      %p95 = por %p93, %p94
      %p96 = scmp.ne.s32.totalorder %s88, %s90
      %p97 = scmp.eq.s32.totalorder %s24, 1
      %p98 = por %p96, %p97
      %p99 = scmp.ne.s32.totalorder %s90, %s91
      %p100 = scmp.eq.s32.totalorder %s24, 0
      %p101 = por %p99, %p100
      %p102 = scmp.ne.s32.totalorder %s90, %s91
      %p103 = scmp.eq.s32.totalorder %s25, 1
      %p104 = por %p102, %p103
      %p106 = scmp.ne.s32.totalorder %s91, %s105
      %p107 = scmp.eq.s32.totalorder %s25, 0
      %p108 = por %p106, %p107
      %s110 = sadd.s32 %s109, 1
      %p113 = scmp.eq.s32.totalorder %s19, 1
      %p114 = scmp.ne.s32.totalorder %s109, %s111
      %p115 = scmp.eq.s32.totalorder %s19, 0
      %p116 = por %p114, %p115
      %p117 = scmp.ne.s32.totalorder %s109, %s111
      %p118 = scmp.eq.s32.totalorder %s24, 1
      %p119 = por %p117, %p118
      %p120 = scmp.ne.s32.totalorder %s111, %s112
      %p121 = scmp.eq.s32.totalorder %s24, 0
      %p122 = por %p120, %p121
      %p123 = scmp.ne.s32.totalorder %s111, %s112
      %p124 = scmp.eq.s32.totalorder %s25, 1
      %p125 = por %p123, %p124
      %p127 = scmp.ne.s32.totalorder %s112, %s126
      %p128 = scmp.eq.s32.totalorder %s25, 0
      %p129 = por %p127, %p128
      %s131 = sadd.s32 %s130, 1
      %p134 = scmp.eq.s32.totalorder %s19, 1
      %p135 = scmp.ne.s32.totalorder %s130, %s132
      %p136 = scmp.eq.s32.totalorder %s19, 0
      %p137 = por %p135, %p136
      %p138 = scmp.ne.s32.totalorder %s130, %s132
      %p139 = scmp.eq.s32.totalorder %s24, 1
      %p140 = por %p138, %p139
      %p141 = scmp.ne.s32.totalorder %s132, %s133
      %p142 = scmp.eq.s32.totalorder %s24, 0
      %p143 = por %p141, %p142
      %p144 = scmp.ne.s32.totalorder %s132, %s133
      %p145 = scmp.eq.s32.totalorder %s25, 1
      %p146 = por %p144, %p145
      %p148 = scmp.ne.s32.totalorder %s133, %s147
      %p149 = scmp.eq.s32.totalorder %s25, 0
      %p150 = por %p148, %p149
      %s152 = sadd.s32 %s151, 1
      %p155 = scmp.eq.s32.totalorder %s19, 1
      %p156 = scmp.ne.s32.totalorder %s151, %s153
      %p157 = scmp.eq.s32.totalorder %s19, 0
      %p158 = por %p156, %p157
      %p159 = scmp.ne.s32.totalorder %s151, %s153
      %p160 = scmp.eq.s32.totalorder %s24, 1
      %p161 = por %p159, %p160
      %p162 = scmp.ne.s32.totalorder %s153, %s154
      %p163 = scmp.eq.s32.totalorder %s24, 0
      %p164 = por %p162, %p163
      %p165 = scmp.ne.s32.totalorder %s153, %s154
      %p166 = scmp.eq.s32.totalorder %s25, 1
      %p167 = por %p165, %p166
      %p169 = scmp.ne.s32.totalorder %s154, %s168
      %p170 = scmp.eq.s32.totalorder %s25, 0
      %p171 = por %p169, %p170
      %s173 = sadd.s32 %s172, 1
      %p176 = scmp.eq.s32.totalorder %s19, 1
      %p177 = scmp.ne.s32.totalorder %s172, %s174
      %p178 = scmp.eq.s32.totalorder %s19, 0
      %p179 = por %p177, %p178
      %p180 = scmp.ne.s32.totalorder %s172, %s174
      %p181 = scmp.eq.s32.totalorder %s24, 1
      %p182 = por %p180, %p181
      %p183 = scmp.ne.s32.totalorder %s174, %s175
      %p184 = scmp.eq.s32.totalorder %s24, 0
      %p185 = por %p183, %p184
      %p186 = scmp.ne.s32.totalorder %s174, %s175
      %p187 = scmp.eq.s32.totalorder %s25, 1
      %p188 = por %p186, %p187
      %p190 = scmp.ne.s32.totalorder %s175, %s189
      %p191 = scmp.eq.s32.totalorder %s25, 0
      %p192 = por %p190, %p191
      %s193 = ssub.s32 %s26, %s38
      %s194 = ssub.s32 %s27, %s34
      %s195 = sor.u32 %s193, %s194
      %p196 = scmp.eq.s32.totalorder %s195, 0
      %s198 = sadd.s32 %s197, 1
      %s199 = scalar_select %p196, %s197, %s198
      %p202 = pneg %p196
      %p203 = scmp.eq.s32.totalorder %s19, 1
      %p204 = por %p202, %p203
      %p205 = scmp.ne.s32.totalorder %s197, %s200
      %p206 = scmp.eq.s32.totalorder %s19, 0
      %p207 = por %p205, %p206
      %p208 = scmp.ne.s32.totalorder %s197, %s200
      %p209 = scmp.eq.s32.totalorder %s24, 1
      %p210 = por %p208, %p209
      %p211 = scmp.ne.s32.totalorder %s200, %s201
      %p212 = scmp.eq.s32.totalorder %s24, 0
      %p213 = por %p211, %p212
      %p214 = scmp.ne.s32.totalorder %s200, %s201
      %p215 = scmp.eq.s32.totalorder %s25, 1
      %p216 = por %p214, %p215
      %p218 = scmp.ne.s32.totalorder %s201, %s217
      %p219 = scmp.eq.s32.totalorder %s25, 0
      %p220 = por %p218, %p219
      %p221 = scmp.le.s32.totalorder 1, %s19
      %p222 = scmp.lt.s32.totalorder %s19, 3
      %p223 = pnand %p221, %p222
      %p224 = pneg %p223
      // Predicated region
      $region9: #{tpu_custom_call.1} parent=5 // pred_check
        _
      $region10: #{tpu_custom_call.1} parent=5 // pred_check_branch
        %226 = sbr.rel (%p223) target = $region12
      $region11: #{tpu_custom_call.1} parent=5 // pred_region
        %s227 = ssub.s32 %s19, 1
        // Predicated region
        $region13: #{tpu_custom_call.1} parent=11 // pred_check
          %p228 = pneg %p80
        $region14: #{tpu_custom_call.1} parent=11 // pred_check_branch
          %230 = sbr.rel (%p228) target = $region16
        $region15: #{tpu_custom_call.1} parent=11 // pred_region
          _
        $region16: #{tpu_custom_call.1} parent=11 // pred_fallthru
          _
        // Predicated region
        $region17: #{tpu_custom_call.1} parent=11 // pred_check
          %p231 = pneg %p101
        $region18: #{tpu_custom_call.1} parent=11 // pred_check_branch
          %233 = sbr.rel (%p231) target = $region20
        $region19: #{tpu_custom_call.1} parent=11 // pred_region
          _
        $region20: #{tpu_custom_call.1} parent=11 // pred_fallthru
          _
        // Predicated region
        $region21: #{tpu_custom_call.1} parent=11 // pred_check
          %p234 = pneg %p122
        $region22: #{tpu_custom_call.1} parent=11 // pred_check_branch
          %236 = sbr.rel (%p234) target = $region24
        $region23: #{tpu_custom_call.1} parent=11 // pred_region
          _
        $region24: #{tpu_custom_call.1} parent=11 // pred_fallthru
          _
        // Predicated region
        $region25: #{tpu_custom_call.1} parent=11 // pred_check
          %p237 = pneg %p143
        $region26: #{tpu_custom_call.1} parent=11 // pred_check_branch
          %239 = sbr.rel (%p237) target = $region28
        $region27: #{tpu_custom_call.1} parent=11 // pred_region
          _
        $region28: #{tpu_custom_call.1} parent=11 // pred_fallthru
          _
        // Predicated region
        $region29: #{tpu_custom_call.1} parent=11 // pred_check
          %p240 = pneg %p164
        $region30: #{tpu_custom_call.1} parent=11 // pred_check_branch
          %242 = sbr.rel (%p240) target = $region32
        $region31: #{tpu_custom_call.1} parent=11 // pred_region
          _
        $region32: #{tpu_custom_call.1} parent=11 // pred_fallthru
          _
        // Predicated region
        $region33: #{tpu_custom_call.1} parent=11 // pred_check
          %p243 = pneg %p185
        $region34: #{tpu_custom_call.1} parent=11 // pred_check_branch
          %245 = sbr.rel (%p243) target = $region36
        $region35: #{tpu_custom_call.1} parent=11 // pred_region
          _
        $region36: #{tpu_custom_call.1} parent=11 // pred_fallthru
          _
      $region12: #{tpu_custom_call.1} parent=5 // pred_fallthru
        _
      %p246 = scmp.lt.s32.totalorder %s19, 2
      // Predicated region
      $region37: #{tpu_custom_call.1} parent=5 // pred_check
        %p247 = pneg %p246
      $region38: #{tpu_custom_call.1} parent=5 // pred_check_branch
        %249 = sbr.rel (%p247) target = $region40
      $region39: #{tpu_custom_call.1} parent=5 // pred_region
        // Predicated region
        $region41: #{tpu_custom_call.1} parent=39 // pred_check
          %p250 = pneg %p53
        $region42: #{tpu_custom_call.1} parent=39 // pred_check_branch
          %252 = sbr.rel (%p250) target = $region44
        $region43: #{tpu_custom_call.1} parent=39 // pred_region
          %s253 = sand.u32 %s43, 1
          %s254 = scalar_lea.sflag [#allocation5], %s253
          %s255 = sand.u32 %s43, 1
          %s256 = smul.addr %s255, 4
          %s257 = scalar_lea.vmem [#allocation4], %s256
          %s259 = ssub.s32 64, 64
          %260 = vsyncadd %s254, %s259
          %s261 = sadd.s32 %s27, %s26
          %s262 = smul.addr %s261, 64
          %s263 = scalar_lea.hbm %s0, %s262
          %s265 = sshll.u32 %s257, 4
          %s266 = int_to_ptr.vmem [resolvable:$true] %s265
          %268 = dma.hbm_to_vmem [thread:$0]  %s263, 64, %s266, %s254
        $region44: #{tpu_custom_call.1} parent=39 // pred_fallthru
          _
      $region40: #{tpu_custom_call.1} parent=5 // pred_fallthru
        _
      %p269 = scmp.le.s32.totalorder 1, %s19
      %p270 = scmp.lt.s32.totalorder %s19, 3
      %p271 = pnand %p269, %p270
      %p272 = pneg %p271
      // Predicated region
      $region45: #{tpu_custom_call.1} parent=5 // pred_check
        _
      $region46: #{tpu_custom_call.1} parent=5 // pred_check_branch
        %274 = sbr.rel (%p271) target = $region48
      $region47: #{tpu_custom_call.1} parent=5 // pred_region
        %s275 = ssub.s32 %s19, 1
        %s276 = sand.u32 %s46, 1
        %s277 = scalar_lea.sflag [#allocation5], %s276
        %s278 = sand.u32 %s46, 1
        %s279 = smul.addr %s278, 4
        %s280 = scalar_lea.vmem [#allocation4], %s279
        // Predicated region
        $region49: #{tpu_custom_call.1} parent=47 // pred_check
          %p281 = pneg %p59
        $region50: #{tpu_custom_call.1} parent=47 // pred_check_branch
          %283 = sbr.rel (%p281) target = $region52
        $region51: #{tpu_custom_call.1} parent=47 // pred_region
          %284 = dma.done %s277, 64
        $region52: #{tpu_custom_call.1} parent=47 // pred_fallthru
          _
        %s285 = sand.u32 %s46, 1
        %s286 = scalar_lea.sflag [#allocation5], %s285
        %s287 = sand.u32 %s46, 1
        %s288 = smul.addr %s287, 4
        %s289 = scalar_lea.vmem [#allocation4], %s288
        %p290 = pneg %p59
        %p291 = pneg %p56
        %p292 = pneg %p80
        %p293 = pneg %p77
        %p294 = pneg %p101
        %p295 = pneg %p98
        %p296 = pneg %p122
        %p297 = pneg %p119
        %p298 = pneg %p143
        %p299 = pneg %p140
        %p300 = pneg %p164
        %p301 = pneg %p161
        %p302 = pneg %p185
        %p303 = pneg %p182
        %p304 = pneg %p213
        %p305 = pneg %p210
        %s306 = sand.u32 %s200, 1
        %s307 = scalar_lea.sflag [#allocation6], %s306
        %s308 = sand.u32 %s200, 1
        %s309 = smul.addr %s308, 8
        %s310 = scalar_lea.vmem [#allocation7], %s309
        %p312 = scmp.eq.s32.totalorder %s29, 0
        // Predicated region
        $region53: #{tpu_custom_call.1} parent=47 // pred_check
          %p313 = pneg %p312
        $region54: #{tpu_custom_call.1} parent=47 // pred_check_branch
          %315 = sbr.rel (%p313) target = $region56
        $region55: #{tpu_custom_call.1} parent=47 // pred_region
          %316 = vst [vmem:[#allocation2] sm:$0xff] 0
          %vm317 = vcmask 130048
          %318 = vst.msk [vmem:[#allocation2 + $0x8] sm:$0xff] %vm317, 0
          %319 = vst [vmem:[#allocation3] sm:$0xff] 0
          %320 = vst.msk [vmem:[#allocation3 + $0x8] sm:$0xff] %vm317, 0
        $region56: #{tpu_custom_call.1} parent=47 // pred_fallthru
          _
        %p321 = scmp.gt.s32.totalorder %s29, 0
        // Predicated region
        $region57: #{tpu_custom_call.1} parent=47 // pred_check
          %p322 = pneg %p321
        $region58: #{tpu_custom_call.1} parent=47 // pred_check_branch
          %324 = sbr.rel (%p322) target = $region60
        $region59: #{tpu_custom_call.1} parent=47 // pred_region
          %v325 = vld [vmem:[#allocation2 + $0x8] sm:$0xff]
          %327 = vrot.lane.b32.xlu0 %v325, 112
          %v328 = vpop.permute.xlu0 %327
          %vm330 = vcmask 1048560
          %331 = vst.msk [vmem:[#allocation2] sm:$0xff] %vm330, %v328
          %v332 = vld [vmem:[#allocation3 + $0x8] sm:$0xff]
          %334 = vrot.lane.b32.xlu0 %v332, 112
          %v335 = vpop.permute.xlu0 %334
          %337 = vst.msk [vmem:[#allocation3] sm:$0xff] %vm330, %v335
        $region60: #{tpu_custom_call.1} parent=47 // pred_fallthru
          _
        %v338 = vld [vmem:[%s280] sm:$0xf]
        %v339 = vpack.c.bf16 %v338, %v338
        %vm340 = vcmask 123904
        %341 = vst.msk [vmem:[#allocation2 + $0x8] sm:$0x3] %vm340, %v339
        %v342 = vld [vmem:[#allocation2 + $0x8] sm:$0xff]
        %s343 = scalar_lea.vmem %s1, 16
        %v344 = vld [vmem:[%s343] sm:$0xf]
        %v345 = vld [vmem:[%s343 + $0x4] sm:$0xf]
        %v346 = vld [vmem:[%s1] sm:$0xf]
        %v347 = vld [vmem:[%s1 + $0x4] sm:$0xf]
        %v348 = vld [vmem:[#allocation2] sm:$0xff]
        %v351 = vunpack.c.l.b16 %v346
        %v352 = vunpack.c.l.b16 %v347
        %v353 = vpack.c.b16 %v352, %v351
        %356 = vrot.lane.b32.xlu0 %v348, 2
        %v357 = vpop.permute.xlu0 %356
        %358 = vrot.lane.b32.xlu0 %v342, 2
        %v359 = vpop.permute.xlu0 %358
        %vm360 = vcmask 15360
        %v361 = vsel %vm360, %v357, %v359
        %vm363 = vcmask 130048
        %v365 = vsel %vm363, %v353, 0
        %367 = vmatprep.subr.bf16.mxu0 0
        %368 = vmatpush1.bf16.msra.mxu0 %v361
        %369 = vmatprep.subr.bf16.mxu0 0
        %370 = vmatpush1.bf16.msra.mxu0 0
        %371 = vmatprep.subr.bf16.mxu0 0
        %372 = vmatpush1.bf16.msra.mxu0 0
        %373 = vmatprep.subr.bf16.mxu0 0
        %374 = vmatpush1.bf16.msra.mxu0 0
        %375 = vmatprep.subr.bf16.mxu0 0
        %376 = vmatpush1.bf16.msra.mxu0 0
        %377 = vmatprep.subr.bf16.mxu0 0
        %378 = vmatpush1.bf16.msra.mxu0 0
        %379 = vmatprep.subr.bf16.mxu0 0
        %380 = vmatpush1.bf16.msra.mxu0 0
        %381 = vmatprep.subr.bf16.mxu0 0
        %382 = vmatpush1.bf16.msra.mxu0 0
        %383 = vmatprep.subr.bf16.mxu0 0
        %384 = vmatpush1.bf16.msra.mxu0 0
        %385 = vmatprep.subr.bf16.mxu0 0
        %386 = vmatpush1.bf16.msra.mxu0 0
        %387 = vmatprep.subr.bf16.mxu0 0
        %388 = vmatpush1.bf16.msra.mxu0 0
        %389 = vmatprep.subr.bf16.mxu0 0
        %390 = vmatpush1.bf16.msra.mxu0 0
        %391 = vmatprep.subr.bf16.mxu0 0
        %392 = vmatpush1.bf16.msra.mxu0 0
        %393 = vmatprep.subr.bf16.mxu0 0
        %394 = vmatpush1.bf16.msra.mxu0 0
        %395 = vmatprep.subr.bf16.mxu0 0
        %396 = vmatpush1.bf16.msra.mxu0 0
        %397 = vmatprep.subr.bf16.mxu0 0
        %398 = vmatpush1.bf16.msra.mxu0 0
        %399 = vmatprep.mubr.bf16.mxu0 0
        %400 = vmatmul.mubr.bf16.gmra.mrb[0].mxu0 %v365
        %v401 = vpop.f32.mrb[0].mxu0
        %v402 = vadd.f32 0.0, %v401
        %v403 = vpop.f32.mrb[0].mxu0
        %v404 = vpop.f32.mrb[0].mxu0
        %v405 = vadd.f32 0.0, %v404
        %v406 = vpop.f32.mrb[0].mxu0
        %407 = vdwg.mxu0
        %v410 = vunpack.c.l.b16 %v344
        %v411 = vunpack.c.l.b16 %v345
        %v412 = vpack.c.b16 %v411, %v410
        %v414 = vsel %vm363, %v412, 0
        %416 = vmatprep.subr.bf16.mxu0 0
        %417 = vmatpush1.bf16.msra.mxu0 %v342
        %418 = vmatprep.subr.bf16.mxu0 0
        %419 = vmatpush1.bf16.msra.mxu0 0
        %420 = vmatprep.subr.bf16.mxu0 0
        %421 = vmatpush1.bf16.msra.mxu0 0
        %422 = vmatprep.subr.bf16.mxu0 0
        %423 = vmatpush1.bf16.msra.mxu0 0
        %424 = vmatprep.subr.bf16.mxu0 0
        %425 = vmatpush1.bf16.msra.mxu0 0
        %426 = vmatprep.subr.bf16.mxu0 0
        %427 = vmatpush1.bf16.msra.mxu0 0
        %428 = vmatprep.subr.bf16.mxu0 0
        %429 = vmatpush1.bf16.msra.mxu0 0
        %430 = vmatprep.subr.bf16.mxu0 0
        %431 = vmatpush1.bf16.msra.mxu0 0
        %432 = vmatprep.subr.bf16.mxu0 0
        %433 = vmatpush1.bf16.msra.mxu0 0
        %434 = vmatprep.subr.bf16.mxu0 0
        %435 = vmatpush1.bf16.msra.mxu0 0
        %436 = vmatprep.subr.bf16.mxu0 0
        %437 = vmatpush1.bf16.msra.mxu0 0
        %438 = vmatprep.subr.bf16.mxu0 0
        %439 = vmatpush1.bf16.msra.mxu0 0
        %440 = vmatprep.subr.bf16.mxu0 0
        %441 = vmatpush1.bf16.msra.mxu0 0
        %442 = vmatprep.subr.bf16.mxu0 0
        %443 = vmatpush1.bf16.msra.mxu0 0
        %444 = vmatprep.subr.bf16.mxu0 0
        %445 = vmatpush1.bf16.msra.mxu0 0
        %446 = vmatprep.subr.bf16.mxu0 0
        %447 = vmatpush1.bf16.msra.mxu0 0
        %448 = vmatprep.mubr.bf16.mxu0 0
        %449 = vmatmul.mubr.bf16.gmra.mrb[0].mxu0 %v414
        %v450 = vpop.f32.mrb[0].mxu0
        %v451 = vadd.f32 %v402, %v450
        %v452 = vpop.f32.mrb[0].mxu0
        %v453 = vpop.f32.mrb[0].mxu0
        %v454 = vadd.f32 %v405, %v453
        %v455 = vpop.f32.mrb[0].mxu0
        %456 = vdwg.mxu0
        %s457 = scalar_lea.vmem %s1, 8
        %v458 = vld [vmem:[%s457] sm:$0xf]
        %v459 = vld [vmem:[%s457 + $0x4] sm:$0xf]
        %v462 = vunpack.c.l.b16 %v458
        %v463 = vunpack.c.l.b16 %v459
        %v464 = vpack.c.b16 %v463, %v462
        %465 = vrot.lane.b32.xlu0 %v348, 1
        %v466 = vpop.permute.xlu0 %465
        %467 = vrot.lane.b32.xlu0 %v342, 1
        %v468 = vpop.permute.xlu0 %467
        %vm469 = vcmask 7168
        %v470 = vsel %vm469, %v466, %v468
        %v473 = vsel %vm363, %v464, 0
        %475 = vmatprep.subr.bf16.mxu0 0
        %476 = vmatpush1.bf16.msra.mxu0 %v470
        %477 = vmatprep.subr.bf16.mxu0 0
        %478 = vmatpush1.bf16.msra.mxu0 0
        %479 = vmatprep.subr.bf16.mxu0 0
        %480 = vmatpush1.bf16.msra.mxu0 0
        %481 = vmatprep.subr.bf16.mxu0 0
        %482 = vmatpush1.bf16.msra.mxu0 0
        %483 = vmatprep.subr.bf16.mxu0 0
        %484 = vmatpush1.bf16.msra.mxu0 0
        %485 = vmatprep.subr.bf16.mxu0 0
        %486 = vmatpush1.bf16.msra.mxu0 0
        %487 = vmatprep.subr.bf16.mxu0 0
        %488 = vmatpush1.bf16.msra.mxu0 0
        %489 = vmatprep.subr.bf16.mxu0 0
        %490 = vmatpush1.bf16.msra.mxu0 0
        %491 = vmatprep.subr.bf16.mxu0 0
        %492 = vmatpush1.bf16.msra.mxu0 0
        %493 = vmatprep.subr.bf16.mxu0 0
        %494 = vmatpush1.bf16.msra.mxu0 0
        %495 = vmatprep.subr.bf16.mxu0 0
        %496 = vmatpush1.bf16.msra.mxu0 0
        %497 = vmatprep.subr.bf16.mxu0 0
        %498 = vmatpush1.bf16.msra.mxu0 0
        %499 = vmatprep.subr.bf16.mxu0 0
        %500 = vmatpush1.bf16.msra.mxu0 0
        %501 = vmatprep.subr.bf16.mxu0 0
        %502 = vmatpush1.bf16.msra.mxu0 0
        %503 = vmatprep.subr.bf16.mxu0 0
        %504 = vmatpush1.bf16.msra.mxu0 0
        %505 = vmatprep.subr.bf16.mxu0 0
        %506 = vmatpush1.bf16.msra.mxu0 0
        %507 = vmatprep.mubr.bf16.mxu0 0
        %508 = vmatmul.mubr.bf16.gmra.mrb[0].mxu0 %v473
        %v509 = vpop.f32.mrb[0].mxu0
        %v510 = vadd.f32 0.0, %v509
        %v511 = vpop.f32.mrb[0].mxu0
        %v512 = vpop.f32.mrb[0].mxu0
        %v513 = vadd.f32 0.0, %v512
        %v514 = vpop.f32.mrb[0].mxu0
        %515 = vdwg.mxu0
        %v516 = vadd.f32 %v451, %v510
        %v517 = vadd.f32 %v454, %v513
        %v518 = vld [vmem:[%s2] sm:$0xff]
        %v519 = vld [vmem:[%s2 + $0x8] sm:$0xff]
        %521 = vset.pattern.permute.xlu0 0
        %522 = vperm.xlu0 %521, %v518
        %v523 = vpop.permute.xlu0 %522
        %526 = vset.pattern.permute.xlu0 0
        %527 = vperm.xlu0 %526, %v519
        %v528 = vpop.permute.xlu0 %527
        %v530 = vadd.f32 %v516, %v523
        %v531 = vadd.f32 %v517, %v528
        %v532 = vmax.f32 %v530, 0.0
        %v533 = vmax.f32 %v531, 0.0
        %v534 = vpack.c.bf16 %v533, %v532
        %535 = vst.msk [vmem:[#allocation3 + $0x8] sm:$0xff] %vm363, %v534
        %s536 = scalar_lea.vmem %s3, 16
        %v537 = vld [vmem:[%s536] sm:$0xf]
        %v538 = vld [vmem:[%s536 + $0x4] sm:$0xf]
        %v539 = vld [vmem:[%s3] sm:$0xf]
        %v540 = vld [vmem:[%s3 + $0x4] sm:$0xf]
        %v541 = vld [vmem:[#allocation3] sm:$0xff]
        %v542 = vld [vmem:[#allocation3 + $0x8] sm:$0xff]
        %v545 = vunpack.c.l.b16 %v539
        %v546 = vunpack.c.l.b16 %v540
        %v547 = vpack.c.b16 %v546, %v545
        %550 = vrot.lane.b32.xlu0 %v541, 2
        %v551 = vpop.permute.xlu0 %550
        %552 = vrot.lane.b32.xlu0 %v542, 2
        %v553 = vpop.permute.xlu0 %552
        %v554 = vsel %vm360, %v551, %v553
        %v557 = vsel %vm363, %v547, 0
        %559 = vmatprep.subr.bf16.mxu0 0
        %560 = vmatpush1.bf16.msra.mxu0 %v554
        %561 = vmatprep.subr.bf16.mxu0 0
        %562 = vmatpush1.bf16.msra.mxu0 0
        %563 = vmatprep.subr.bf16.mxu0 0
        %564 = vmatpush1.bf16.msra.mxu0 0
        %565 = vmatprep.subr.bf16.mxu0 0
        %566 = vmatpush1.bf16.msra.mxu0 0
        %567 = vmatprep.subr.bf16.mxu0 0
        %568 = vmatpush1.bf16.msra.mxu0 0
        %569 = vmatprep.subr.bf16.mxu0 0
        %570 = vmatpush1.bf16.msra.mxu0 0
        %571 = vmatprep.subr.bf16.mxu0 0
        %572 = vmatpush1.bf16.msra.mxu0 0
        %573 = vmatprep.subr.bf16.mxu0 0
        %574 = vmatpush1.bf16.msra.mxu0 0
        %575 = vmatprep.subr.bf16.mxu0 0
        %576 = vmatpush1.bf16.msra.mxu0 0
        %577 = vmatprep.subr.bf16.mxu0 0
        %578 = vmatpush1.bf16.msra.mxu0 0
        %579 = vmatprep.subr.bf16.mxu0 0
        %580 = vmatpush1.bf16.msra.mxu0 0
        %581 = vmatprep.subr.bf16.mxu0 0
        %582 = vmatpush1.bf16.msra.mxu0 0
        %583 = vmatprep.subr.bf16.mxu0 0
        %584 = vmatpush1.bf16.msra.mxu0 0
        %585 = vmatprep.subr.bf16.mxu0 0
        %586 = vmatpush1.bf16.msra.mxu0 0
        %587 = vmatprep.subr.bf16.mxu0 0
        %588 = vmatpush1.bf16.msra.mxu0 0
        %589 = vmatprep.subr.bf16.mxu0 0
        %590 = vmatpush1.bf16.msra.mxu0 0
        %591 = vmatprep.mubr.bf16.mxu0 0
        %592 = vmatmul.mubr.bf16.gmra.mrb[0].mxu0 %v557
        %v593 = vpop.f32.mrb[0].mxu0
        %v594 = vadd.f32 0.0, %v593
        %v595 = vpop.f32.mrb[0].mxu0
        %v596 = vpop.f32.mrb[0].mxu0
        %v597 = vpop.f32.mrb[0].mxu0
        %598 = vdwg.mxu0
        %v601 = vunpack.c.l.b16 %v537
        %v602 = vunpack.c.l.b16 %v538
        %v603 = vpack.c.b16 %v602, %v601
        %v605 = vsel %vm363, %v603, 0
        %607 = vmatprep.subr.bf16.mxu0 0
        %608 = vmatpush1.bf16.msra.mxu0 %v534
        %609 = vmatprep.subr.bf16.mxu0 0
        %610 = vmatpush1.bf16.msra.mxu0 0
        %611 = vmatprep.subr.bf16.mxu0 0
        %612 = vmatpush1.bf16.msra.mxu0 0
        %613 = vmatprep.subr.bf16.mxu0 0
        %614 = vmatpush1.bf16.msra.mxu0 0
        %615 = vmatprep.subr.bf16.mxu0 0
        %616 = vmatpush1.bf16.msra.mxu0 0
        %617 = vmatprep.subr.bf16.mxu0 0
        %618 = vmatpush1.bf16.msra.mxu0 0
        %619 = vmatprep.subr.bf16.mxu0 0
        %620 = vmatpush1.bf16.msra.mxu0 0
        %621 = vmatprep.subr.bf16.mxu0 0
        %622 = vmatpush1.bf16.msra.mxu0 0
        %623 = vmatprep.subr.bf16.mxu0 0
        %624 = vmatpush1.bf16.msra.mxu0 0
        %625 = vmatprep.subr.bf16.mxu0 0
        %626 = vmatpush1.bf16.msra.mxu0 0
        %627 = vmatprep.subr.bf16.mxu0 0
        %628 = vmatpush1.bf16.msra.mxu0 0
        %629 = vmatprep.subr.bf16.mxu0 0
        %630 = vmatpush1.bf16.msra.mxu0 0
        %631 = vmatprep.subr.bf16.mxu0 0
        %632 = vmatpush1.bf16.msra.mxu0 0
        %633 = vmatprep.subr.bf16.mxu0 0
        %634 = vmatpush1.bf16.msra.mxu0 0
        %635 = vmatprep.subr.bf16.mxu0 0
        %636 = vmatpush1.bf16.msra.mxu0 0
        %637 = vmatprep.subr.bf16.mxu0 0
        %638 = vmatpush1.bf16.msra.mxu0 0
        %639 = vmatprep.mubr.bf16.mxu0 0
        %640 = vmatmul.mubr.bf16.gmra.mrb[0].mxu0 %v605
        %v641 = vpop.f32.mrb[0].mxu0
        %v642 = vadd.f32 %v594, %v641
        %v643 = vpop.f32.mrb[0].mxu0
        %v644 = vpop.f32.mrb[0].mxu0
        %v645 = vpop.f32.mrb[0].mxu0
        %646 = vdwg.mxu0
        %s647 = scalar_lea.vmem %s3, 8
        %v648 = vld [vmem:[%s647] sm:$0xf]
        %v649 = vld [vmem:[%s647 + $0x4] sm:$0xf]
        %v652 = vunpack.c.l.b16 %v648
        %v653 = vunpack.c.l.b16 %v649
        %v654 = vpack.c.b16 %v653, %v652
        %655 = vrot.lane.b32.xlu0 %v541, 1
        %v656 = vpop.permute.xlu0 %655
        %657 = vrot.lane.b32.xlu0 %v542, 1
        %v658 = vpop.permute.xlu0 %657
        %v659 = vsel %vm469, %v656, %v658
        %v662 = vsel %vm363, %v654, 0
        %664 = vmatprep.subr.bf16.mxu0 0
        %665 = vmatpush1.bf16.msra.mxu0 %v659
        %666 = vmatprep.subr.bf16.mxu0 0
        %667 = vmatpush1.bf16.msra.mxu0 0
        %668 = vmatprep.subr.bf16.mxu0 0
        %669 = vmatpush1.bf16.msra.mxu0 0
        %670 = vmatprep.subr.bf16.mxu0 0
        %671 = vmatpush1.bf16.msra.mxu0 0
        %672 = vmatprep.subr.bf16.mxu0 0
        %673 = vmatpush1.bf16.msra.mxu0 0
        %674 = vmatprep.subr.bf16.mxu0 0
        %675 = vmatpush1.bf16.msra.mxu0 0
        %676 = vmatprep.subr.bf16.mxu0 0
        %677 = vmatpush1.bf16.msra.mxu0 0
        %678 = vmatprep.subr.bf16.mxu0 0
        %679 = vmatpush1.bf16.msra.mxu0 0
        %680 = vmatprep.subr.bf16.mxu0 0
        %681 = vmatpush1.bf16.msra.mxu0 0
        %682 = vmatprep.subr.bf16.mxu0 0
        %683 = vmatpush1.bf16.msra.mxu0 0
        %684 = vmatprep.subr.bf16.mxu0 0
        %685 = vmatpush1.bf16.msra.mxu0 0
        %686 = vmatprep.subr.bf16.mxu0 0
        %687 = vmatpush1.bf16.msra.mxu0 0
        %688 = vmatprep.subr.bf16.mxu0 0
        %689 = vmatpush1.bf16.msra.mxu0 0
        %690 = vmatprep.subr.bf16.mxu0 0
        %691 = vmatpush1.bf16.msra.mxu0 0
        %692 = vmatprep.subr.bf16.mxu0 0
        %693 = vmatpush1.bf16.msra.mxu0 0
        %694 = vmatprep.subr.bf16.mxu0 0
        %695 = vmatpush1.bf16.msra.mxu0 0
        %696 = vmatprep.mubr.bf16.mxu0 0
        %697 = vmatmul.mubr.bf16.gmra.mrb[0].mxu0 %v662
        %v698 = vpop.f32.mrb[0].mxu0
        %v699 = vadd.f32 0.0, %v698
        %v700 = vpop.f32.mrb[0].mxu0
        %v701 = vpop.f32.mrb[0].mxu0
        %v702 = vpop.f32.mrb[0].mxu0
        %703 = vdwg.mxu0
        %v704 = vadd.f32 %v642, %v699
        %v705 = vld [vmem:[%s4] sm:$0xff]
        %707 = vset.pattern.permute.xlu0 0
        %708 = vperm.xlu0 %707, %v705
        %v709 = vpop.permute.xlu0 %708
        %v711 = vadd.f32 %v704, %v709
        %v712 = vmax.f32 %v711, 0.0
        %v713 = vld [vmem:[%s5] sm:$0xf]
        %v714 = vld [vmem:[%s5 + $0x4] sm:$0xf]
        %v715 = vld [vmem:[%s6] sm:$0xff]
        %v716 = vld [vmem:[%s6 + $0x8] sm:$0xff]
        %718 = vset.pattern.permute.xlu0 0
        %719 = vperm.xlu0 %718, %v715
        %v720 = vpop.permute.xlu0 %719
        %723 = vset.pattern.permute.xlu0 0
        %724 = vperm.xlu0 %723, %v716
        %v725 = vpop.permute.xlu0 %724
        %v728 = vunpack.c.l.b16 %v713
        %v729 = vunpack.c.l.b16 %v714
        %v730 = vpack.c.b16 %v729, %v728
        %v732 = vsel %vm363, %v730, 0
        %734 = vmatprep.subr.bf16.mxu0 0
        %735 = vmatpush1.bf16.msra.mxu0 %v342
        %736 = vmatprep.subr.bf16.mxu0 0
        %737 = vmatpush1.bf16.msra.mxu0 0
        %738 = vmatprep.subr.bf16.mxu0 0
        %739 = vmatpush1.bf16.msra.mxu0 0
        %740 = vmatprep.subr.bf16.mxu0 0
        %741 = vmatpush1.bf16.msra.mxu0 0
        %742 = vmatprep.subr.bf16.mxu0 0
        %743 = vmatpush1.bf16.msra.mxu0 0
        %744 = vmatprep.subr.bf16.mxu0 0
        %745 = vmatpush1.bf16.msra.mxu0 0
        %746 = vmatprep.subr.bf16.mxu0 0
        %747 = vmatpush1.bf16.msra.mxu0 0
        %748 = vmatprep.subr.bf16.mxu0 0
        %749 = vmatpush1.bf16.msra.mxu0 0
        %750 = vmatprep.subr.bf16.mxu0 0
        %751 = vmatpush1.bf16.msra.mxu0 0
        %752 = vmatprep.subr.bf16.mxu0 0
        %753 = vmatpush1.bf16.msra.mxu0 0
        %754 = vmatprep.subr.bf16.mxu0 0
        %755 = vmatpush1.bf16.msra.mxu0 0
        %756 = vmatprep.subr.bf16.mxu0 0
        %757 = vmatpush1.bf16.msra.mxu0 0
        %758 = vmatprep.subr.bf16.mxu0 0
        %759 = vmatpush1.bf16.msra.mxu0 0
        %760 = vmatprep.subr.bf16.mxu0 0
        %761 = vmatpush1.bf16.msra.mxu0 0
        %762 = vmatprep.subr.bf16.mxu0 0
        %763 = vmatpush1.bf16.msra.mxu0 0
        %764 = vmatprep.subr.bf16.mxu0 0
        %765 = vmatpush1.bf16.msra.mxu0 0
        %766 = vmatprep.mubr.bf16.mxu0 0
        %767 = vmatmul.mubr.bf16.gmra.mrb[0].mxu0 %v732
        %v768 = vpop.f32.mrb[0].mxu0
        %v769 = vadd.f32 %v720, %v768
        %v770 = vpop.f32.mrb[0].mxu0
        %v771 = vpop.f32.mrb[0].mxu0
        %v772 = vpop.f32.mrb[0].mxu0
        %773 = vdwg.mxu0
        %v774 = vadd.f32 %v712, %v769
        %v775 = vmax.f32 %v774, 0.0
        %776 = vst.msk [vmem:[%s310] sm:$0xff] %vm363, %v775
        %s777 = sand.u32 %s200, 1
        %s778 = scalar_lea.sflag [#allocation6], %s777
        %s779 = sand.u32 %s200, 1
        %s780 = smul.addr %s779, 8
        %s781 = scalar_lea.vmem [#allocation7], %s780
        // Predicated region
        $region61: #{tpu_custom_call.1} parent=47 // pred_check
          %p782 = pneg %p210
        $region62: #{tpu_custom_call.1} parent=47 // pred_check_branch
          %784 = sbr.rel (%p782) target = $region64
        $region63: #{tpu_custom_call.1} parent=47 // pred_region
          %s786 = ssub.s32 128, 128
          %787 = vsyncadd %s778, %s786
          %s788 = sadd.s32 %s29, %s28
          %s789 = smul.addr %s788, 128
          %s790 = scalar_lea.hbm %s7, %s789
          %s792 = sshll.u32 %s781, 4
          %s793 = int_to_ptr.vmem [resolvable:$true] %s792
          %795 = dma.vmem_to_hbm [thread:$0]  %s793, 128, %s790, %s778
        $region64: #{tpu_custom_call.1} parent=47 // pred_fallthru
          _
      $region48: #{tpu_custom_call.1} parent=5 // pred_fallthru
        _
      %p796 = scmp.le.s32.totalorder 2, %s19
      // Predicated region
      $region65: #{tpu_custom_call.1} parent=5 // pred_check
        %p797 = pneg %p796
      $region66: #{tpu_custom_call.1} parent=5 // pred_check_branch
        %799 = sbr.rel (%p797) target = $region68
      $region67: #{tpu_custom_call.1} parent=5 // pred_region
        %s800 = ssub.s32 %s19, 2
        // Predicated region
        $region69: #{tpu_custom_call.1} parent=67 // pred_check
          %p801 = pneg %p216
        $region70: #{tpu_custom_call.1} parent=67 // pred_check_branch
          %803 = sbr.rel (%p801) target = $region72
        $region71: #{tpu_custom_call.1} parent=67 // pred_region
          %s804 = sand.u32 %s201, 1
          %s805 = scalar_lea.sflag [#allocation6], %s804
          %s806 = sand.u32 %s201, 1
          %s807 = smul.addr %s806, 8
          %s808 = scalar_lea.vmem [#allocation7], %s807
          %809 = dma.done %s805, 128
        $region72: #{tpu_custom_call.1} parent=67 // pred_fallthru
          _
      $region68: #{tpu_custom_call.1} parent=5 // pred_fallthru
        _
    $region6: #{tpu_custom_call.1} parent=1 // loop_footer
      %s23 = sadd.s32 1, %s19
    $region7: #{tpu_custom_call.1} parent=1 // loop_footer_branch
      %18 = sbr.rel target = $region3
    $region8: #{tpu_custom_call.1} parent=1 // loop_exit
      _
    %810 = vsyncpa [#allocation5], 1
    %s811 = scalar_lea.sflag [#allocation5], 1
    %812 = vsyncpa %s811, 1
    %813 = vsyncpa [#allocation6], 1
    %s814 = scalar_lea.sflag [#allocation6], 1
    %815 = vsyncpa %s814, 1

</llo_original>
